<compile_context>
chip_gen: v6e
topology: v6e:2x2x1
jax: 0.10.0
libtpu: 0.0.40
codegen_flags: <defaults>
</compile_context>

<pallas_src>
import functools

import jax
import jax.numpy as jnp
from jax.experimental import pallas as pl
from jax.experimental.pallas import tpu as pltpu

_EPS = 1e-10  # matches the torch default argument


def _resident_kernel(p_ref, t_ref, out_ref, *, eps):
    """Whole problem in one VMEM tile: single pass, exp(p - m) reused for log."""
    p = p_ref[...].astype(jnp.float32)
    t = t_ref[...].astype(jnp.float32)

    m_p = jnp.max(p, keepdims=True)              # (1, 1)
    e_p = jnp.exp(p - m_p)
    s_p = jnp.sum(e_p, keepdims=True)

    m_t = jnp.max(t, keepdims=True)
    e_t = jnp.exp(t - m_t)
    s_t = jnp.sum(e_t, keepdims=True)

    # torch: log(softmax(p) + eps) = log(e_p + eps * s_p) - log(s_p);
    # padded -inf entries give e_p = e_t = 0 and contribute exactly 0.
    w = jnp.sum(e_t * jnp.log(e_p + eps * s_p), keepdims=True)
    out_ref[...] = jnp.log(s_p) - w / s_t


def _streaming_kernel(p_ref, t_ref, out_ref, m_p, s_p, m_t, s_t, w_acc, *,
                      rows, chunk_rows, needs_row_mask, eps):
    phase = pl.program_id(0)          # 0: online max / exp-sum, 1: weighted log
    k = pl.program_id(1)              # chunk index along the row axis
    last_k = pl.num_programs(1) - 1

    @pl.when((phase == 0) & (k == 0))
    def _init():
        m_p[...] = jnp.full((1, 1), -jnp.inf, jnp.float32)
        m_t[...] = jnp.full((1, 1), -jnp.inf, jnp.float32)
        s_p[...] = jnp.zeros((1, 1), jnp.float32)
        s_t[...] = jnp.zeros((1, 1), jnp.float32)
        w_acc[...] = jnp.zeros((1, 1), jnp.float32)

    p = p_ref[...].astype(jnp.float32)            # (chunk_rows, 128)
    t = t_ref[...].astype(jnp.float32)
    if needs_row_mask:
        # Rows past the logical end of the (rows, 128) array are out-of-bounds
        # garbage in the last chunk; force them to -inf (inert for softmax).
        row_ids = jax.lax.broadcasted_iota(jnp.int32, p.shape, 0) + k * chunk_rows
        valid = row_ids < rows
        p = jnp.where(valid, p, -jnp.inf)
        t = jnp.where(valid, t, -jnp.inf)

    @pl.when(phase == 0)
    def _phase0():
        # First-chunk rescale needs no guard: exp(-inf - finite) == 0 exactly.
        mp_new = jnp.maximum(m_p[...], jnp.max(p, keepdims=True))
        s_p[...] = s_p[...] * jnp.exp(m_p[...] - mp_new) + jnp.sum(
            jnp.exp(p - mp_new), keepdims=True)
        m_p[...] = mp_new

        mt_new = jnp.maximum(m_t[...], jnp.max(t, keepdims=True))
        s_t[...] = s_t[...] * jnp.exp(m_t[...] - mt_new) + jnp.sum(
            jnp.exp(t - mt_new), keepdims=True)
        m_t[...] = mt_new

    @pl.when(phase == 1)
    def _phase1():
        # Exact torch eps semantics: log(softmax(p)+eps) = log(e_p + eps*s_p)
        # - log(s_p); the -log(s_p) term is folded into the finalize step.
        e_p = jnp.exp(p - m_p[...])
        e_t = jnp.exp(t - m_t[...])
        w_acc[...] = w_acc[...] + jnp.sum(
            e_t * jnp.log(e_p + eps * s_p[...]), keepdims=True)

    @pl.when((phase == 1) & (k == last_k))
    def _finalize():
        out_ref[...] = jnp.log(s_p[...]) - w_acc[...] / s_t[...]


def listnet_loss(preds, labels, *, chunk_rows=2048, resident_elems=512 * 1024):
    """preds, labels: 1-D arrays of shape (N,). Returns a scalar float32 loss."""
    assert preds.shape == labels.shape and preds.ndim == 1
    assert jnp.issubdtype(preds.dtype, jnp.floating)
    assert jnp.issubdtype(labels.dtype, jnp.floating)
    n = int(preds.shape[0])
    assert n > 0

    rows128 = -(-n // 128)
    use_resident = rows128 * 128 <= resident_elems

    # Layout: lane-dense 2-D view with as little host traffic as possible.
    if n % 128 == 0:
        shape2d, pad = (n // 128, 128), 0            # zero-copy reshape
    elif use_resident and n <= 4096:
        shape2d, pad = (1, n), 0                     # zero-copy ragged view
    else:
        shape2d, pad = (rows128, 128), rows128 * 128 - n   # < 128 elems of -inf

    def to2d(x):
        if pad:
            x = jnp.pad(x, (0, pad), constant_values=-jnp.inf)
        return x.reshape(shape2d)

    p2 = to2d(preds)
    t2 = to2d(labels)
    rows, cols = shape2d
    padded_n = rows * cols
    in_bytes = padded_n * (p2.dtype.itemsize + t2.dtype.itemsize)

    # ------------- fast path: whole problem resident in VMEM -------------
    if use_resident:
        vmem_limit = min(48 << 20,
                         max(16 << 20, 2 * in_bytes + 6 * padded_n * 4 + (2 << 20)))
        cost = pl.CostEstimate(flops=8 * padded_n,
                               transcendentals=3 * padded_n,
                               bytes_accessed=in_bytes + 4)
        out = pl.pallas_call(
            functools.partial(_resident_kernel, eps=_EPS),
            out_shape=jax.ShapeDtypeStruct((1, 1), jnp.float32),
            grid_spec=pltpu.PrefetchScalarGridSpec(
                num_scalar_prefetch=0,
                grid=(1,),
                in_specs=[pl.BlockSpec(shape2d, lambda i: (0, 0)),
                          pl.BlockSpec(shape2d, lambda i: (0, 0))],
                out_specs=pl.BlockSpec((1, 1), lambda i: (0, 0)),
            ),
            compiler_params=pltpu.CompilerParams(
                dimension_semantics=("arbitrary",),
                vmem_limit_bytes=int(vmem_limit)),
            cost_estimate=cost,
        )(p2, t2)
        return out[0, 0]

    # ------------- streaming path: two-phase online softmax -------------
    itemsize = max(p2.dtype.itemsize, t2.dtype.itemsize)
    sub = (4 // itemsize) * 8                 # 8 (f32) / 16 (bf16) / 32 (8-bit)
    cr = int(min(chunk_rows, -(-rows // sub) * sub))
    cr = max(sub, (cr // sub) * sub)
    num_chunks = -(-rows // cr)
    needs_row_mask = (rows % cr) != 0

    tile_bytes = cr * 128 * (p2.dtype.itemsize + t2.dtype.itemsize)
    vmem_limit = min(48 << 20,
                     max(16 << 20, 2 * tile_bytes + 4 * cr * 128 * 4 + (2 << 20)))
    cost = pl.CostEstimate(flops=10 * padded_n,
                           transcendentals=5 * padded_n,   # 2/elem ph0 + 3/elem ph1
                           bytes_accessed=2 * in_bytes + 4)

    kernel = functools.partial(_streaming_kernel, rows=rows, chunk_rows=cr,
                               needs_row_mask=needs_row_mask, eps=_EPS)
    grid_spec = pltpu.PrefetchScalarGridSpec(
        num_scalar_prefetch=0,
        grid=(2, num_chunks),                 # (phase, chunk); chunk axis fastest
        in_specs=[pl.BlockSpec((cr, 128), lambda phase, k: (k, 0)),
                  pl.BlockSpec((cr, 128), lambda phase, k: (k, 0))],
        out_specs=pl.BlockSpec((1, 1), lambda phase, k: (0, 0)),
        scratch_shapes=[pltpu.VMEM((1, 1), jnp.float32) for _ in range(5)],
    )
    out = pl.pallas_call(
        kernel,
        out_shape=jax.ShapeDtypeStruct((1, 1), jnp.float32),
        grid_spec=grid_spec,
        compiler_params=pltpu.CompilerParams(
            dimension_semantics=("arbitrary", "arbitrary"),
            vmem_limit_bytes=int(vmem_limit)),
        cost_estimate=cost,
    )(p2, t2)
    return out[0, 0]


def _reference_listnet_loss(preds, labels, eps=1e-10):
    p = preds[None, :].astype(jnp.float32)
    t = labels[None, :].astype(jnp.float32)
    p_smax = jax.nn.softmax(p, axis=1) + eps
    t_smax = jax.nn.softmax(t, axis=1)
    return jnp.mean(-jnp.sum(t_smax * jnp.log(p_smax), axis=1))


if __name__ == "__main__":
    key = jax.random.PRNGKey(0)
    k1, k2, k3, k4 = jax.random.split(key, 4)

    # Small shape consistent with the module (single list of scores, seq = 8).
    N = 8
    preds = jax.random.normal(k1, (N,), dtype=jnp.float32)
    labels = jax.random.normal(k2, (N,), dtype=jnp.float32)
    loss = listnet_loss(preds, labels)
    jax.block_until_ready(loss)
    ref = _reference_listnet_loss(preds, labels)
    assert jnp.allclose(loss, ref, rtol=1e-5, atol=1e-6), (loss, ref)

    # Force the streaming path: multi-chunk grid, in-kernel OOB row mask, and
    # the <128-element -inf tail pad (2500 % 128 != 0).
    N2 = 2500
    preds2 = 3.0 * jax.random.normal(k3, (N2,), dtype=jnp.float32)
    labels2 = 3.0 * jax.random.normal(k4, (N2,), dtype=jnp.float32)
    loss2 = listnet_loss(preds2, labels2, chunk_rows=16, resident_elems=0)
    jax.block_until_ready(loss2)
    ref2 = _reference_listnet_loss(preds2, labels2)
    assert jnp.allclose(loss2, ref2, rtol=1e-5, atol=1e-6), (loss2, ref2)

    # Resident fast path with a zero-copy (rows, 128) reshape and bf16 inputs.
    N3 = 2048
    preds3 = jax.random.normal(k1, (N3,), dtype=jnp.bfloat16)
    labels3 = jax.random.normal(k2, (N3,), dtype=jnp.bfloat16)
    loss3 = listnet_loss(preds3, labels3)
    jax.block_until_ready(loss3)
    ref3 = _reference_listnet_loss(preds3, labels3)
    assert jnp.allclose(loss3, ref3, rtol=1e-4, atol=1e-4), (loss3, ref3)

    print("KERNEL_OK")
</pallas_src>

<mosaic_0001>
module attributes {stable_mosaic.version = 11 : i64} {
  func.func @_resident_kernel(%arg0: i32, %arg1: memref<1x8xf32, #tpu.memory_space<vmem>>, %arg2: memref<1x8xf32, #tpu.memory_space<vmem>>, %arg3: memref<1x1xf32, #tpu.memory_space<vmem>>) attributes {dimension_semantics = [#tpu.dimension_semantics<arbitrary>], iteration_bounds = array<i64: 1>, scalar_prefetch = 0 : i64, scratch_operands = 0 : i64, tpu.core_type = #tpu.core_type<tc>, window_params = [{pipeline_mode = #tpu.pipeline_mode<synchronous>, transform_indices = @transform_0, window_bounds = array<i64: 1, 8>}, {pipeline_mode = #tpu.pipeline_mode<synchronous>, transform_indices = @transform_1, window_bounds = array<i64: 1, 8>}, {pipeline_mode = #tpu.pipeline_mode<synchronous>, transform_indices = @transform_2, window_bounds = array<i64: 1, 1>}]} {
    %c0 = arith.constant 0 : index
    %c0_0 = arith.constant 0 : index
    %0 = vector.load %arg1[%c0, %c0_0] : memref<1x8xf32, #tpu.memory_space<vmem>>, vector<1x8xf32>
    %c0_1 = arith.constant 0 : index
    %c0_2 = arith.constant 0 : index
    %1 = vector.load %arg2[%c0_1, %c0_2] : memref<1x8xf32, #tpu.memory_space<vmem>>, vector<1x8xf32>
    %2 = vector.shape_cast %0 : vector<1x8xf32> to vector<1x1x8xf32>
    %cst = arith.constant dense<0xFF800000> : vector<1xf32>
    %3 = vector.multi_reduction <maximumf>, %2, %cst [1, 2] : vector<1x1x8xf32> to vector<1xf32>
    %4 = vector.shape_cast %3 : vector<1xf32> to vector<1x1x1xf32>
    %5 = vector.extract %4[0, 0, 0] : f32 from vector<1x1x1xf32>
    %6 = vector.broadcast %5 : f32 to vector<1x1xf32>
    %7 = vector.broadcast %6 : vector<1x1xf32> to vector<1x8xf32>
    %8 = arith.subf %0, %7 : vector<1x8xf32>
    %9 = math.exp %8 : vector<1x8xf32>
    %10 = vector.shape_cast %9 : vector<1x8xf32> to vector<1x1x8xf32>
    %cst_3 = arith.constant dense<0.000000e+00> : vector<1xf32>
    %11 = vector.multi_reduction <add>, %10, %cst_3 [1, 2] : vector<1x1x8xf32> to vector<1xf32>
    %12 = vector.shape_cast %11 : vector<1xf32> to vector<1x1x1xf32>
    %13 = vector.extract %12[0, 0, 0] : f32 from vector<1x1x1xf32>
    %14 = vector.broadcast %13 : f32 to vector<1x1xf32>
    %15 = vector.shape_cast %1 : vector<1x8xf32> to vector<1x1x8xf32>
    %cst_4 = arith.constant dense<0xFF800000> : vector<1xf32>
    %16 = vector.multi_reduction <maximumf>, %15, %cst_4 [1, 2] : vector<1x1x8xf32> to vector<1xf32>
    %17 = vector.shape_cast %16 : vector<1xf32> to vector<1x1x1xf32>
    %18 = vector.extract %17[0, 0, 0] : f32 from vector<1x1x1xf32>
    %19 = vector.broadcast %18 : f32 to vector<1x1xf32>
    %20 = vector.broadcast %19 : vector<1x1xf32> to vector<1x8xf32>
    %21 = arith.subf %1, %20 : vector<1x8xf32>
    %22 = math.exp %21 : vector<1x8xf32>
    %23 = vector.shape_cast %22 : vector<1x8xf32> to vector<1x1x8xf32>
    %cst_5 = arith.constant dense<0.000000e+00> : vector<1xf32>
    %24 = vector.multi_reduction <add>, %23, %cst_5 [1, 2] : vector<1x1x8xf32> to vector<1xf32>
    %25 = vector.shape_cast %24 : vector<1xf32> to vector<1x1x1xf32>
    %26 = vector.extract %25[0, 0, 0] : f32 from vector<1x1x1xf32>
    %27 = vector.broadcast %26 : f32 to vector<1x1xf32>
    %cst_6 = arith.constant 1.000000e-10 : f32
    %28 = vector.broadcast %cst_6 : f32 to vector<1x1xf32>
    %29 = arith.mulf %28, %14 : vector<1x1xf32>
    %30 = vector.broadcast %29 : vector<1x1xf32> to vector<1x8xf32>
    %31 = arith.addf %9, %30 : vector<1x8xf32>
    %32 = math.log %31 : vector<1x8xf32>
    %33 = arith.mulf %22, %32 : vector<1x8xf32>
    %34 = vector.shape_cast %33 : vector<1x8xf32> to vector<1x1x8xf32>
    %cst_7 = arith.constant dense<0.000000e+00> : vector<1xf32>
    %35 = vector.multi_reduction <add>, %34, %cst_7 [1, 2] : vector<1x1x8xf32> to vector<1xf32>
    %36 = vector.shape_cast %35 : vector<1xf32> to vector<1x1x1xf32>
    %37 = vector.extract %36[0, 0, 0] : f32 from vector<1x1x1xf32>
    %38 = vector.broadcast %37 : f32 to vector<1x1xf32>
    %39 = math.log %14 : vector<1x1xf32>
    %40 = arith.divf %38, %27 : vector<1x1xf32>
    %41 = arith.subf %39, %40 : vector<1x1xf32>
    %c0_8 = arith.constant 0 : index
    %c0_9 = arith.constant 0 : index
    %42 = vector.load %arg3[%c0_8, %c0_9] : memref<1x1xf32, #tpu.memory_space<vmem>>, vector<1x1xf32>
    tpu.vector_store %arg3[%c0_8, %c0_9], %41 {strides = array<i32>} : memref<1x1xf32, #tpu.memory_space<vmem>>, vector<1x1xf32>,
    return
  }
  func.func @transform_0(%arg0: i32) -> (i32, i32) {
    %c0_i32 = arith.constant 0 : i32
    %c0_i32_0 = arith.constant 0 : i32
    %c0_i32_1 = arith.constant 0 : i32
    return %c0_i32, %c0_i32_0 : i32, i32
  }
  func.func @transform_1(%arg0: i32) -> (i32, i32) {
    %c0_i32 = arith.constant 0 : i32
    %c0_i32_0 = arith.constant 0 : i32
    %c0_i32_1 = arith.constant 0 : i32
    return %c0_i32, %c0_i32_0 : i32, i32
  }
  func.func @transform_2(%arg0: i32) -> (i32, i32) {
    %c0_i32 = arith.constant 0 : i32
    %c0_i32_0 = arith.constant 0 : i32
    %c0_i32_1 = arith.constant 0 : i32
    return %c0_i32, %c0_i32_0 : i32, i32
  }
}

</mosaic_0001>

<llo_original>
// kernel: tpu_custom_call.1
$region0: #{tpu_custom_call.1}
  #allocation0 [shape = 'u32[]', space=smem, size = 0x4, offset = 0x4, fixed_abs, tag = 'smem constant byte address 0x4 - core index']
  #allocation1 [shape = 'u32[144,128]{1,0:T(1,128)}', space=vmem, size = 0x12000, scoped, tag = 'internal scratch']
  %s0 = inlined_call_operand.hbm [shape: f32[1,8], index: 0, kind: input, shape index: {}]
  %s1 = inlined_call_operand.vmem [shape: f32[1,8], index: 1, kind: input, shape index: {}]
  %s2 = inlined_call_operand.hbm [shape: f32[1,1], index: 2, kind: output, shape index: {}]
  %s3 = sld [smem:[#allocation0]]
  $region22: #{tpu_custom_call.1} parent=0
    _
  %s5 = ssub.s32 1, %s3
  %s6 = scalar_select 0, %s5, %s3
  $region1: #{tpu_custom_call.1} parent=0
    #allocation2 [shape = 'u8[512]{0}', space=vmem, size = 0x400, scoped, tag = 'input window, operand 0, single buffered']
    #allocation3 [shape = 's32[1]{0}', space=sflag, size = 0x4, scoped, tag = 'scoped memory for tpu_custom_call.1']
    #allocation4 [shape = 's32[1]{0}', space=sflag, size = 0x4, scoped, tag = 'scoped memory for tpu_custom_call.1']
    #allocation5 [shape = 'u8[512]{0}', space=vmem, size = 0x400, scoped, tag = 'output window, operand 0, single buffered']
    %7 = vsyncpa [#allocation3], 0
    %8 = vsyncpa [#allocation4], 0
    // Predicated region
    $region2: #{tpu_custom_call.1} parent=1 // pred_check
      _
    $region3: #{tpu_custom_call.1} parent=1 // pred_check_branch
      %10 = sbr.rel (0) target = $region5
    $region4: #{tpu_custom_call.1} parent=1 // pred_region
      %s12 = ssub.s32 16, 16
      %13 = vsyncadd [#allocation3], %s12
      %s15 = sshll.u32 [#allocation2], 4
      %s16 = int_to_ptr.vmem [resolvable:$true] %s15
      %18 = dma.hbm_to_vmem [thread:$0]  %s0, 16, %s16, [#allocation3]
    $region5: #{tpu_custom_call.1} parent=1 // pred_fallthru
      _
    // Predicated region
    $region6: #{tpu_custom_call.1} parent=1 // pred_check
      _
    $region7: #{tpu_custom_call.1} parent=1 // pred_check_branch
      %20 = sbr.rel (0) target = $region9
    $region8: #{tpu_custom_call.1} parent=1 // pred_region
      _
    $region9: #{tpu_custom_call.1} parent=1 // pred_fallthru
      _
    // Predicated region
    $region10: #{tpu_custom_call.1} parent=1 // pred_check
      _
    $region11: #{tpu_custom_call.1} parent=1 // pred_check_branch
      %22 = sbr.rel (0) target = $region13
    $region12: #{tpu_custom_call.1} parent=1 // pred_region
      %23 = dma.done [#allocation3], 16
    $region13: #{tpu_custom_call.1} parent=1 // pred_fallthru
      _
    %v24 = vld [vmem:[#allocation2] sm:$0x1]
    %v25 = vld [vmem:[%s1] sm:$0x1]
    %vm26 = vcmask 57344
    %v27 = vsel %vm26, %v24, -inf
    %28 = vmax.xlane.f32.xlu0 %v27
    %v29 = vpop.xlane.xlu0 %28
    %v30 = vrot.slane %v29, 4
    %v31 = vmax.f32 %v29, %v30
    %v32 = vrot.slane %v31, 2
    %v33 = vmax.f32 %v31, %v32
    %v34 = vrot.slane %v33, 1
    %v35 = vmax.f32 %v33, %v34
    %s36 = vtos %v35
    %v37 = vstv %s36
    %v38 = vsub.f32 %v24, %v37
    %v39 = vmul.f32 %v38, 1.442695
    %v40 = vpow.pop %v39
    %v41 = vsel %vm26, %v40, 0.0
    %42 = vadd.xlane.f32.xlu0 %v41
    %v43 = vpop.xlane.xlu0 %42
    %v44 = vrot.slane %v43, 4
    %v45 = vadd.f32 %v43, %v44
    %v46 = vrot.slane %v45, 2
    %v47 = vadd.f32 %v45, %v46
    %v48 = vrot.slane %v47, 1
    %v49 = vadd.f32 %v47, %v48
    %s50 = vtos %v49
    %v51 = vstv %s50
    %v52 = vsel %vm26, %v25, -inf
    %53 = vmax.xlane.f32.xlu0 %v52
    %v54 = vpop.xlane.xlu0 %53
    %v55 = vrot.slane %v54, 4
    %v56 = vmax.f32 %v54, %v55
    %v57 = vrot.slane %v56, 2
    %v58 = vmax.f32 %v56, %v57
    %v59 = vrot.slane %v58, 1
    %v60 = vmax.f32 %v58, %v59
    %s61 = vtos %v60
    %v62 = vstv %s61
    %v63 = vsub.f32 %v25, %v62
    %v64 = vmul.f32 %v63, 1.442695
    %v65 = vpow.pop %v64
    %v66 = vsel %vm26, %v65, 0.0
    %67 = vadd.xlane.f32.xlu0 %v66
    %v68 = vpop.xlane.xlu0 %67
    %v69 = vrot.slane %v68, 4
    %v70 = vadd.f32 %v68, %v69
    %v71 = vrot.slane %v70, 2
    %v72 = vadd.f32 %v70, %v71
    %v73 = vrot.slane %v72, 1
    %v74 = vadd.f32 %v72, %v73
    %s75 = vtos %v74
    %v76 = vstv %s75
    %v77 = vmul.f32 %v51, 1e-10
    %v78 = vadd.f32 %v40, %v77
    %v79 = vlog2.pop %v78
    %v80 = vmul.f32 %v79, 0.6931472
    %v81 = vmul.f32 %v65, %v80
    %v82 = vsel %vm26, %v81, 0.0
    %83 = vadd.xlane.f32.xlu0 %v82
    %v84 = vpop.xlane.xlu0 %83
    %v85 = vrot.slane %v84, 4
    %v86 = vadd.f32 %v84, %v85
    %v87 = vrot.slane %v86, 2
    %v88 = vadd.f32 %v86, %v87
    %v89 = vrot.slane %v88, 1
    %v90 = vadd.f32 %v88, %v89
    %s91 = vtos %v90
    %v92 = vstv %s91
    %v93 = vlog2.pop %v51
    %v94 = vmul.f32 %v93, 0.6931472
    %v95 = vrcp.pop %v76
    %v96 = vmul.f32 %v92, %v95
    %v97 = vsub.f32 %v94, %v96
    %vm98 = vcmask 0
    %99 = vst.msk [vmem:[#allocation5] sm:$0x1] %vm98, %v97
    // Predicated region
    $region14: #{tpu_custom_call.1} parent=1 // pred_check
      _
    $region15: #{tpu_custom_call.1} parent=1 // pred_check_branch
      %101 = sbr.rel (0) target = $region17
    $region16: #{tpu_custom_call.1} parent=1 // pred_region
      %s103 = ssub.s32 16, 16
      %104 = vsyncadd [#allocation4], %s103
      %s106 = sshll.u32 [#allocation5], 4
      %s107 = int_to_ptr.vmem [resolvable:$true] %s106
      %109 = dma.vmem_to_hbm [thread:$0]  %s107, 16, %s2, [#allocation4]
    $region17: #{tpu_custom_call.1} parent=1 // pred_fallthru
      _
    // Predicated region
    $region18: #{tpu_custom_call.1} parent=1 // pred_check
      _
    $region19: #{tpu_custom_call.1} parent=1 // pred_check_branch
      %111 = sbr.rel (0) target = $region21
    $region20: #{tpu_custom_call.1} parent=1 // pred_region
      %112 = dma.done [#allocation4], 16
    $region21: #{tpu_custom_call.1} parent=1 // pred_fallthru
      _
    %113 = vsyncpa [#allocation3], 1
    %114 = vsyncpa [#allocation4], 1

</llo_original>
